<compile_context>
chip_gen: v7x
topology: tpu7x:2x2x1
jax: 0.10.0
libtpu: 0.0.40
codegen_flags: <defaults>
</compile_context>

<pallas_src>
import functools

import jax
import jax.numpy as jnp
from jax.experimental import pallas as pl
from jax.experimental.pallas import tpu as pltpu


def _triplet_loss_kernel(a_ref, p_ref, n_ref, out_ref, *, margin, batch,
                         tile_rows, blocks_per_core):
    c = pl.program_id(0)   # core-split axis ("parallel")
    i = pl.program_id(1)   # batch-block axis ("arbitrary", accumulated)

    @pl.when(i == 0)
    def _init():
        out_ref[...] = jnp.zeros_like(out_ref)

    a = a_ref[...]
    p = p_ref[...]
    n = n_ref[...]

    # Fused distance difference; subtract in input dtype, accumulate in f32.
    dp = (a - p).astype(jnp.float32)
    dn = (a - n).astype(jnp.float32)
    delta = dp * dp - dn * dn                         # (TB, D)
    d = jnp.sum(delta, axis=1, keepdims=True)         # (TB, 1)
    hinge = jnp.maximum(d + margin, 0.0)              # (TB, 1)

    # Mask rows past the true batch (partial last tile or clamped duplicate
    # block on the unused core), so they contribute 0 to the sum.
    row0 = (c * blocks_per_core + i) * tile_rows
    rows = row0 + jax.lax.broadcasted_iota(jnp.int32, hinge.shape, 0)
    hinge = jnp.where(rows < batch, hinge, 0.0)

    # Per-core running partial sum, broadcast across the lane-dense block.
    out_ref[...] += jnp.sum(hinge)


def triplet_loss(a, p, n, margin=1.0):
    """a, p, n: (B, D) arrays. Returns scalar float32 loss."""
    assert a.shape == p.shape == n.shape
    B, D = a.shape
    itemsize = jnp.dtype(a.dtype).itemsize

    # Tile the batch so 3 inputs x 2 pipeline buffers stay under ~24 MiB
    # (portable across v5e / v6e / v7x per-core VMEM budgets).
    budget_bytes = 24 * 1024 * 1024
    tb = budget_bytes // (6 * D * itemsize)
    tb = int(max(8, min(tb, 2048)) // 8 * 8)
    if tb >= B:
        tb = B                              # single tile == full array dims

    nb = pl.cdiv(B, tb)                     # total batch blocks
    nbpc = pl.cdiv(nb, 2)                   # blocks per core (v7x megacore)

    def in_map(c, i):
        # Clamp so the (possibly duplicated) last block never DMAs past the
        # array; duplicated rows are masked out inside the kernel.
        return (jnp.minimum(c * nbpc + i, nb - 1), 0)

    kernel = functools.partial(
        _triplet_loss_kernel,
        margin=float(margin),
        batch=B,
        tile_rows=tb,
        blocks_per_core=nbpc,
    )

    out = pl.pallas_call(
        kernel,
        out_shape=jax.ShapeDtypeStruct((1, 2 * 128), jnp.float32),
        grid_spec=pltpu.PrefetchScalarGridSpec(
            num_scalar_prefetch=0,
            grid=(2, nbpc),
            in_specs=[
                pl.BlockSpec((tb, D), in_map),
                pl.BlockSpec((tb, D), in_map),
                pl.BlockSpec((tb, D), in_map),
            ],
            out_specs=pl.BlockSpec((1, 128), lambda c, i: (0, c)),
        ),
        compiler_params=pltpu.CompilerParams(
            dimension_semantics=("parallel", "arbitrary"),
            vmem_limit_bytes=48 * 1024 * 1024,
        ),
        cost_estimate=pl.CostEstimate(
            flops=6 * B * D,
            transcendentals=0,
            bytes_accessed=3 * B * D * itemsize + 2 * 128 * 4,
        ),
    )(a, p, n)

    # Each core's (1,128) block holds its partial hinge-sum replicated across
    # lanes; combine the two per-core partials and take the mean.
    return (out[0, 0] + out[0, 128]) * (1.0 / B)


def _reference(a, p, n, margin=1.0):
    d_pos = jnp.sum((a - p) ** 2, axis=1)
    d_neg = jnp.sum((a - n) ** 2, axis=1)
    return jnp.mean(jnp.maximum(d_pos - d_neg + margin, 0.0))


if __name__ == "__main__":
    key = jax.random.PRNGKey(0)
    ka, kp, kn = jax.random.split(key, 3)

    B, D = 8, 32  # small embedding batch consistent with the module's forward
    a = jax.random.normal(ka, (B, D), dtype=jnp.float32)
    p = jax.random.normal(kp, (B, D), dtype=jnp.float32)
    n = jax.random.normal(kn, (B, D), dtype=jnp.float32)

    loss = triplet_loss(a, p, n, margin=1.0)
    loss = jax.block_until_ready(loss)

    ref = _reference(a, p, n, margin=1.0)
    assert jnp.allclose(loss, ref, rtol=1e-5, atol=1e-5), (loss, ref)

    print("KERNEL_OK")
</pallas_src>

<mosaic_0001>
module attributes {stable_mosaic.version = 11 : i64} {
  func.func @_triplet_loss_kernel(%arg0: i32, %arg1: i32, %arg2: memref<8x32xf32, #tpu.memory_space<vmem>>, %arg3: memref<8x32xf32, #tpu.memory_space<vmem>>, %arg4: memref<8x32xf32, #tpu.memory_space<vmem>>, %arg5: memref<1x128xf32, #tpu.memory_space<vmem>>) attributes {dimension_semantics = [#tpu.dimension_semantics<parallel>, #tpu.dimension_semantics<arbitrary>], iteration_bounds = array<i64: 2, 1>, scalar_prefetch = 0 : i64, scratch_operands = 0 : i64, tpu.core_type = #tpu.core_type<tc>, window_params = [{transform_indices = @transform_0, window_bounds = array<i64: 8, 32>}, {transform_indices = @transform_1, window_bounds = array<i64: 8, 32>}, {transform_indices = @transform_2, window_bounds = array<i64: 8, 32>}, {transform_indices = @transform_3, window_bounds = array<i64: 1, 128>}]} {
    %c0_i32 = arith.constant 0 : i32
    %0 = arith.cmpi eq, %arg1, %c0_i32 : i32
    %1 = arith.extui %0 : i1 to i32
    %c0_i32_0 = arith.constant 0 : i32
    %2 = arith.cmpi ne, %1, %c0_i32_0 : i32
    scf.if %2 {
      %cst_15 = arith.constant 0.000000e+00 : f32
      %35 = vector.broadcast %cst_15 : f32 to vector<1x128xf32>
      %c0_16 = arith.constant 0 : index
      %c0_17 = arith.constant 0 : index
      %36 = vector.load %arg5[%c0_16, %c0_17] : memref<1x128xf32, #tpu.memory_space<vmem>>, vector<1x128xf32>
      tpu.vector_store %arg5[%c0_16, %c0_17], %35 {strides = array<i32>} : memref<1x128xf32, #tpu.memory_space<vmem>>, vector<1x128xf32>,
    } else {
    }
    %c0 = arith.constant 0 : index
    %c0_1 = arith.constant 0 : index
    %3 = vector.load %arg2[%c0, %c0_1] : memref<8x32xf32, #tpu.memory_space<vmem>>, vector<8x32xf32>
    %c0_2 = arith.constant 0 : index
    %c0_3 = arith.constant 0 : index
    %4 = vector.load %arg3[%c0_2, %c0_3] : memref<8x32xf32, #tpu.memory_space<vmem>>, vector<8x32xf32>
    %c0_4 = arith.constant 0 : index
    %c0_5 = arith.constant 0 : index
    %5 = vector.load %arg4[%c0_4, %c0_5] : memref<8x32xf32, #tpu.memory_space<vmem>>, vector<8x32xf32>
    %6 = arith.subf %3, %4 : vector<8x32xf32>
    %7 = arith.subf %3, %5 : vector<8x32xf32>
    %8 = arith.mulf %6, %6 : vector<8x32xf32>
    %9 = arith.mulf %7, %7 : vector<8x32xf32>
    %10 = arith.subf %8, %9 : vector<8x32xf32>
    %cst = arith.constant dense<0.000000e+00> : vector<8xf32>
    %11 = vector.multi_reduction <add>, %10, %cst [1] : vector<8x32xf32> to vector<8xf32>
    %12 = vector.shape_cast %11 : vector<8xf32> to vector<8x1xf32>
    %cst_6 = arith.constant 1.000000e+00 : f32
    %13 = vector.broadcast %cst_6 : f32 to vector<8x1xf32>
    %14 = arith.addf %12, %13 : vector<8x1xf32>
    %cst_7 = arith.constant 0.000000e+00 : f32
    %15 = vector.broadcast %cst_7 : f32 to vector<8x1xf32>
    %16 = arith.maximumf %14, %15 : vector<8x1xf32>
    %c1_i32 = arith.constant 1 : i32
    %17 = arith.muli %arg0, %c1_i32 : i32
    %18 = arith.addi %17, %arg1 : i32
    %c8_i32 = arith.constant 8 : i32
    %19 = arith.muli %18, %c8_i32 : i32
    %20 = tpu.iota {dimensions = array<i32: 0>} : vector<8x1xi32>
    %21 = vector.broadcast %19 : i32 to vector<8x1xi32>
    %22 = arith.addi %21, %20 : vector<8x1xi32>
    %c8_i32_8 = arith.constant 8 : i32
    %23 = vector.broadcast %c8_i32_8 : i32 to vector<8x1xi32>
    %24 = arith.cmpi slt, %22, %23 : vector<8x1xi32>
    %cst_9 = arith.constant 0.000000e+00 : f32
    %25 = vector.broadcast %cst_9 : f32 to vector<8x1xf32>
    %26 = arith.select %24, %16, %25 : vector<8x1xi1>, vector<8x1xf32>
    %c0_10 = arith.constant 0 : index
    %c0_11 = arith.constant 0 : index
    %27 = vector.load %arg5[%c0_10, %c0_11] : memref<1x128xf32, #tpu.memory_space<vmem>>, vector<1x128xf32>
    %28 = vector.shape_cast %26 : vector<8x1xf32> to vector<1x8x1xf32>
    %cst_12 = arith.constant dense<0.000000e+00> : vector<1xf32>
    %29 = vector.multi_reduction <add>, %28, %cst_12 [1, 2] : vector<1x8x1xf32> to vector<1xf32>
    %30 = vector.shape_cast %29 : vector<1xf32> to vector<1x1x1xf32>
    %31 = vector.extract %30[0, 0, 0] : f32 from vector<1x1x1xf32>
    %32 = vector.broadcast %31 : f32 to vector<1x128xf32>
    %33 = arith.addf %27, %32 : vector<1x128xf32>
    %c0_13 = arith.constant 0 : index
    %c0_14 = arith.constant 0 : index
    %34 = vector.load %arg5[%c0_13, %c0_14] : memref<1x128xf32, #tpu.memory_space<vmem>>, vector<1x128xf32>
    tpu.vector_store %arg5[%c0_13, %c0_14], %33 {strides = array<i32>} : memref<1x128xf32, #tpu.memory_space<vmem>>, vector<1x128xf32>,
    return
  }
  func.func @transform_0(%arg0: i32, %arg1: i32) -> (i32, i32) {
    %c1_i32 = arith.constant 1 : i32
    %0 = arith.muli %arg0, %c1_i32 : i32
    %1 = arith.addi %0, %arg1 : i32
    %c0_i32 = arith.constant 0 : i32
    %2 = arith.minsi %1, %c0_i32 : i32
    %c0_i32_0 = arith.constant 0 : i32
    %c0_i32_1 = arith.constant 0 : i32
    return %2, %c0_i32_0 : i32, i32
  }
  func.func @transform_1(%arg0: i32, %arg1: i32) -> (i32, i32) {
    %c1_i32 = arith.constant 1 : i32
    %0 = arith.muli %arg0, %c1_i32 : i32
    %1 = arith.addi %0, %arg1 : i32
    %c0_i32 = arith.constant 0 : i32
    %2 = arith.minsi %1, %c0_i32 : i32
    %c0_i32_0 = arith.constant 0 : i32
    %c0_i32_1 = arith.constant 0 : i32
    return %2, %c0_i32_0 : i32, i32
  }
  func.func @transform_2(%arg0: i32, %arg1: i32) -> (i32, i32) {
    %c1_i32 = arith.constant 1 : i32
    %0 = arith.muli %arg0, %c1_i32 : i32
    %1 = arith.addi %0, %arg1 : i32
    %c0_i32 = arith.constant 0 : i32
    %2 = arith.minsi %1, %c0_i32 : i32
    %c0_i32_0 = arith.constant 0 : i32
    %c0_i32_1 = arith.constant 0 : i32
    return %2, %c0_i32_0 : i32, i32
  }
  func.func @transform_3(%arg0: i32, %arg1: i32) -> (i32, i32) {
    %c0_i32 = arith.constant 0 : i32
    %c0_i32_0 = arith.constant 0 : i32
    return %c0_i32, %arg0 : i32, i32
  }
}

</mosaic_0001>

<llo_original>
// kernel: tpu_custom_call.1
$region0: #{tpu_custom_call.1}
  #allocation0 [shape = 'u32[]', space=smem, size = 0x4, offset = 0x4, fixed_abs, tag = 'smem constant byte address 0x4 - core index']
  #allocation1 [shape = 'u32[144,128]{1,0:T(1,128)}', space=vmem, size = 0x12000, scoped, tag = 'internal scratch']
  %s0 = inlined_call_operand.hbm [shape: f32[8,32], index: 0, kind: input, shape index: {}]
  %s1 = inlined_call_operand.hbm [shape: f32[8,32], index: 1, kind: input, shape index: {}]
  %s2 = inlined_call_operand.hbm [shape: f32[8,32], index: 2, kind: input, shape index: {}]
  %s3 = inlined_call_operand.hbm [shape: f32[1,256], index: 3, kind: output, shape index: {}]
  %s4 = sld [smem:[#allocation0]]
  $region61: #{tpu_custom_call.1} parent=0
    _
  %s6 = ssub.s32 1, %s4
  %s7 = scalar_select 0, %s6, %s4
  $region1: #{tpu_custom_call.1} parent=0
    #allocation2 [shape = 'u8[8192]{0}', space=vmem, size = 0x2000, scoped, tag = 'input window, operand 0']
    #allocation3 [shape = 's32[2]{0}', space=sflag, size = 0x8, scoped, tag = 'scoped memory for tpu_custom_call.1']
    #allocation4 [shape = 's32[2]{0}', space=sflag, size = 0x8, scoped, tag = 'scoped memory for tpu_custom_call.1']
    #allocation5 [shape = 'u8[8192]{0}', space=vmem, size = 0x2000, scoped, tag = 'input window, operand 1']
    #allocation6 [shape = 's32[2]{0}', space=sflag, size = 0x8, scoped, tag = 'scoped memory for tpu_custom_call.1']
    #allocation7 [shape = 'u8[8192]{0}', space=vmem, size = 0x2000, scoped, tag = 'input window, operand 2']
    #allocation8 [shape = 'u8[1024]{0}', space=vmem, size = 0x400, scoped, tag = 'output window, operand 0']
    %8 = vsyncpa [#allocation3], 0
    %s9 = scalar_lea.sflag [#allocation3], 1
    %10 = vsyncpa %s9, 0
    %11 = vsyncpa [#allocation6], 0
    %s12 = scalar_lea.sflag [#allocation6], 1
    %13 = vsyncpa %s12, 0
    %14 = vsyncpa [#allocation4], 0
    %s15 = scalar_lea.sflag [#allocation4], 1
    %16 = vsyncpa %s15, 0
    loop: start=0, step=1, limit=4
    $region2: #{tpu_custom_call.1} parent=1 // loop_pre_header
      _
    $region3: #{tpu_custom_call.1} parent=1 // loop_header
      %s18 = sphi 0, %s22
      %p19 = scmp.ge.s32.totalorder %s18, 4
      %s25 = sphi 0, %s37
      %s26 = sphi 0, %s33
      %s27 = sphi 0, %s25
      %s28 = sphi 0, %s26
      %s29 = sphi 0, %s27
      %s30 = sphi 0, %s28
      %s46 = sphi 0, %s48
      %s49 = sphi 0, %s46
      %s50 = sphi 0, %s49
      %s66 = sphi 0, %s50
      %s78 = sphi 0, %s80
      %s81 = sphi 0, %s78
      %s82 = sphi 0, %s81
      %s98 = sphi 0, %s82
      %s110 = sphi 0, %s112
      %s113 = sphi 0, %s110
      %s114 = sphi 0, %s113
      %s130 = sphi 0, %s114
      %s136 = sphi 0, %s138
      %s139 = sphi 0, %s136
      %s140 = sphi 0, %s139
      %s156 = sphi 0, %s140
    $region4: #{tpu_custom_call.1} parent=1 // loop_header_branch
      %21 = sbr.rel (%p19) target = $region8
    $region5: #{tpu_custom_call.1} parent=1 // loop_body
      %s23 = ssub.s32 %s18, 1
      %s24 = ssub.s32 %s18, 2
      %s31 = sadd.s32 1, %s26
      %p32 = scmp.ge.s32.totalorder %s31, 1
      %s33 = scalar_select %p32, 0, %s31
      %s34 = sadd.s32 1, %s25
      %s35 = scalar_select %p32, %s34, %s25
      %p36 = scmp.ge.s32.totalorder %s35, 2
      %s37 = scalar_select %p36, 0, %s35
      %s38 = sadd.s32 %s25, %s26
      %p39 = scmp.lt.s32.totalorder %s38, 0
      %s40 = scalar_select %p39, %s38, 0
      %s41 = sadd.s32 %s37, %s33
      %p42 = scmp.lt.s32.totalorder %s41, 0
      %s43 = scalar_select %p42, %s41, 0
      %s44 = ssub.s32 %s40, %s43
      %p45 = scmp.eq.s32.totalorder %s44, 0
      %s47 = sadd.s32 %s46, 1
      %s48 = scalar_select %p45, %s46, %s47
      %p51 = pneg %p45
      %p52 = scmp.eq.s32.totalorder %s18, 1
      %p53 = por %p51, %p52
      %p54 = scmp.ne.s32.totalorder %s46, %s49
      %p55 = scmp.eq.s32.totalorder %s18, 0
      %p56 = por %p54, %p55
      %p57 = scmp.ne.s32.totalorder %s46, %s49
      %p58 = scmp.eq.s32.totalorder %s23, 1
      %p59 = por %p57, %p58
      %p60 = scmp.ne.s32.totalorder %s49, %s50
      %p61 = scmp.eq.s32.totalorder %s23, 0
      %p62 = por %p60, %p61
      %p63 = scmp.ne.s32.totalorder %s49, %s50
      %p64 = scmp.eq.s32.totalorder %s24, 1
      %p65 = por %p63, %p64
      %p67 = scmp.ne.s32.totalorder %s50, %s66
      %p68 = scmp.eq.s32.totalorder %s24, 0
      %p69 = por %p67, %p68
      %s70 = sadd.s32 %s25, %s26
      %p71 = scmp.lt.s32.totalorder %s70, 0
      %s72 = scalar_select %p71, %s70, 0
      %s73 = sadd.s32 %s37, %s33
      %p74 = scmp.lt.s32.totalorder %s73, 0
      %s75 = scalar_select %p74, %s73, 0
      %s76 = ssub.s32 %s72, %s75
      %p77 = scmp.eq.s32.totalorder %s76, 0
      %s79 = sadd.s32 %s78, 1
      %s80 = scalar_select %p77, %s78, %s79
      %p83 = pneg %p77
      %p84 = scmp.eq.s32.totalorder %s18, 1
      %p85 = por %p83, %p84
      %p86 = scmp.ne.s32.totalorder %s78, %s81
      %p87 = scmp.eq.s32.totalorder %s18, 0
      %p88 = por %p86, %p87
      %p89 = scmp.ne.s32.totalorder %s78, %s81
      %p90 = scmp.eq.s32.totalorder %s23, 1
      %p91 = por %p89, %p90
      %p92 = scmp.ne.s32.totalorder %s81, %s82
      %p93 = scmp.eq.s32.totalorder %s23, 0
      %p94 = por %p92, %p93
      %p95 = scmp.ne.s32.totalorder %s81, %s82
      %p96 = scmp.eq.s32.totalorder %s24, 1
      %p97 = por %p95, %p96
      %p99 = scmp.ne.s32.totalorder %s82, %s98
      %p100 = scmp.eq.s32.totalorder %s24, 0
      %p101 = por %p99, %p100
      %s102 = sadd.s32 %s25, %s26
      %p103 = scmp.lt.s32.totalorder %s102, 0
      %s104 = scalar_select %p103, %s102, 0
      %s105 = sadd.s32 %s37, %s33
      %p106 = scmp.lt.s32.totalorder %s105, 0
      %s107 = scalar_select %p106, %s105, 0
      %s108 = ssub.s32 %s104, %s107
      %p109 = scmp.eq.s32.totalorder %s108, 0
      %s111 = sadd.s32 %s110, 1
      %s112 = scalar_select %p109, %s110, %s111
      %p115 = pneg %p109
      %p116 = scmp.eq.s32.totalorder %s18, 1
      %p117 = por %p115, %p116
      %p118 = scmp.ne.s32.totalorder %s110, %s113
      %p119 = scmp.eq.s32.totalorder %s18, 0
      %p120 = por %p118, %p119
      %p121 = scmp.ne.s32.totalorder %s110, %s113
      %p122 = scmp.eq.s32.totalorder %s23, 1
      %p123 = por %p121, %p122
      %p124 = scmp.ne.s32.totalorder %s113, %s114
      %p125 = scmp.eq.s32.totalorder %s23, 0
      %p126 = por %p124, %p125
      %p127 = scmp.ne.s32.totalorder %s113, %s114
      %p128 = scmp.eq.s32.totalorder %s24, 1
      %p129 = por %p127, %p128
      %p131 = scmp.ne.s32.totalorder %s114, %s130
      %p132 = scmp.eq.s32.totalorder %s24, 0
      %p133 = por %p131, %p132
      %s134 = ssub.s32 %s25, %s37
      %p135 = scmp.eq.s32.totalorder %s134, 0
      %s137 = sadd.s32 %s136, 1
      %s138 = scalar_select %p135, %s136, %s137
      %p141 = pneg %p135
      %p142 = scmp.eq.s32.totalorder %s18, 1
      %p143 = por %p141, %p142
      %p144 = scmp.ne.s32.totalorder %s136, %s139
      %p145 = scmp.eq.s32.totalorder %s18, 0
      %p146 = por %p144, %p145
      %p147 = scmp.ne.s32.totalorder %s136, %s139
      %p148 = scmp.eq.s32.totalorder %s23, 1
      %p149 = por %p147, %p148
      %p150 = scmp.ne.s32.totalorder %s139, %s140
      %p151 = scmp.eq.s32.totalorder %s23, 0
      %p152 = por %p150, %p151
      %p153 = scmp.ne.s32.totalorder %s139, %s140
      %p154 = scmp.eq.s32.totalorder %s24, 1
      %p155 = por %p153, %p154
      %p157 = scmp.ne.s32.totalorder %s140, %s156
      %p158 = scmp.eq.s32.totalorder %s24, 0
      %p159 = por %p157, %p158
      %p160 = scmp.le.s32.totalorder 1, %s18
      %p161 = scmp.lt.s32.totalorder %s18, 3
      %p162 = pnand %p160, %p161
      %p163 = pneg %p162
      // Predicated region
      $region9: #{tpu_custom_call.1} parent=5 // pred_check
        _
      $region10: #{tpu_custom_call.1} parent=5 // pred_check_branch
        %165 = sbr.rel (%p162) target = $region12
      $region11: #{tpu_custom_call.1} parent=5 // pred_region
        %s166 = ssub.s32 %s18, 1
      $region12: #{tpu_custom_call.1} parent=5 // pred_fallthru
        _
      %p167 = scmp.lt.s32.totalorder %s18, 2
      // Predicated region
      $region13: #{tpu_custom_call.1} parent=5 // pred_check
        %p168 = pneg %p167
      $region14: #{tpu_custom_call.1} parent=5 // pred_check_branch
        %170 = sbr.rel (%p168) target = $region16
      $region15: #{tpu_custom_call.1} parent=5 // pred_region
        // Predicated region
        $region17: #{tpu_custom_call.1} parent=15 // pred_check
          %p171 = pneg %p56
        $region18: #{tpu_custom_call.1} parent=15 // pred_check_branch
          %173 = sbr.rel (%p171) target = $region20
        $region19: #{tpu_custom_call.1} parent=15 // pred_region
          %s174 = sand.u32 %s46, 1
          %s175 = scalar_lea.sflag [#allocation3], %s174
          %s176 = sand.u32 %s46, 1
          %s177 = smul.addr %s176, 8
          %s178 = scalar_lea.vmem [#allocation2], %s177
          %s179 = sadd.s32 %s25, %s26
          %p180 = scmp.lt.s32.totalorder %s179, 0
          %s181 = scalar_select %p180, %s179, 0
          %s183 = ssub.s32 128, 128
          %184 = vsyncadd %s175, %s183
          %s185 = smul.addr %s181, 128
          %s186 = scalar_lea.hbm %s0, %s185
          %s188 = sshll.u32 %s178, 4
          %s189 = int_to_ptr.vmem [resolvable:$true] %s188
          %191 = dma.hbm_to_vmem [thread:$0]  %s186, 128, %s189, %s175
        $region20: #{tpu_custom_call.1} parent=15 // pred_fallthru
          _
        // Predicated region
        $region21: #{tpu_custom_call.1} parent=15 // pred_check
          %p192 = pneg %p88
        $region22: #{tpu_custom_call.1} parent=15 // pred_check_branch
          %194 = sbr.rel (%p192) target = $region24
        $region23: #{tpu_custom_call.1} parent=15 // pred_region
          %s195 = sand.u32 %s18, 1
          %s196 = scalar_lea.sflag [#allocation6], %s195
          %s197 = sand.u32 %s78, 1
          %s198 = smul.addr %s197, 8
          %s199 = scalar_lea.vmem [#allocation5], %s198
          %s200 = sadd.s32 %s25, %s26
          %p201 = scmp.lt.s32.totalorder %s200, 0
          %s202 = scalar_select %p201, %s200, 0
          %s204 = ssub.s32 128, 128
          %205 = vsyncadd %s196, %s204
          %s206 = smul.addr %s202, 128
          %s207 = scalar_lea.hbm %s1, %s206
          %s209 = sshll.u32 %s199, 4
          %s210 = int_to_ptr.vmem [resolvable:$true] %s209
          %212 = dma.hbm_to_vmem [thread:$0]  %s207, 128, %s210, %s196
        $region24: #{tpu_custom_call.1} parent=15 // pred_fallthru
          _
        // Predicated region
        $region25: #{tpu_custom_call.1} parent=15 // pred_check
          %p213 = pneg %p120
        $region26: #{tpu_custom_call.1} parent=15 // pred_check_branch
          %215 = sbr.rel (%p213) target = $region28
        $region27: #{tpu_custom_call.1} parent=15 // pred_region
          %s216 = sand.u32 %s18, 1
          %s217 = scalar_lea.sflag [#allocation6], %s216
          %s218 = sand.u32 %s110, 1
          %s219 = smul.addr %s218, 8
          %s220 = scalar_lea.vmem [#allocation7], %s219
          %s221 = sadd.s32 %s25, %s26
          %p222 = scmp.lt.s32.totalorder %s221, 0
          %s223 = scalar_select %p222, %s221, 0
          %s225 = ssub.s32 128, 128
          %226 = vsyncadd %s217, %s225
          %s227 = smul.addr %s223, 128
          %s228 = scalar_lea.hbm %s2, %s227
          %s230 = sshll.u32 %s220, 4
          %s231 = int_to_ptr.vmem [resolvable:$true] %s230
          %233 = dma.hbm_to_vmem [thread:$0]  %s228, 128, %s231, %s217
        $region28: #{tpu_custom_call.1} parent=15 // pred_fallthru
          _
      $region16: #{tpu_custom_call.1} parent=5 // pred_fallthru
        _
      %p234 = scmp.le.s32.totalorder 1, %s18
      %p235 = scmp.lt.s32.totalorder %s18, 3
      %p236 = pnand %p234, %p235
      %p237 = pneg %p236
      // Predicated region
      $region29: #{tpu_custom_call.1} parent=5 // pred_check
        _
      $region30: #{tpu_custom_call.1} parent=5 // pred_check_branch
        %239 = sbr.rel (%p236) target = $region32
      $region31: #{tpu_custom_call.1} parent=5 // pred_region
        %s240 = ssub.s32 %s18, 1
        %s241 = sand.u32 %s49, 1
        %s242 = scalar_lea.sflag [#allocation3], %s241
        %s243 = sand.u32 %s49, 1
        %s244 = smul.addr %s243, 8
        %s245 = scalar_lea.vmem [#allocation2], %s244
        // Predicated region
        $region33: #{tpu_custom_call.1} parent=31 // pred_check
          %p246 = pneg %p62
        $region34: #{tpu_custom_call.1} parent=31 // pred_check_branch
          %248 = sbr.rel (%p246) target = $region36
        $region35: #{tpu_custom_call.1} parent=31 // pred_region
          %249 = dma.done %s242, 128
        $region36: #{tpu_custom_call.1} parent=31 // pred_fallthru
          _
        %s250 = sand.u32 %s23, 1
        %s251 = scalar_lea.sflag [#allocation6], %s250
        %s252 = sand.u32 %s81, 1
        %s253 = smul.addr %s252, 8
        %s254 = scalar_lea.vmem [#allocation5], %s253
        // Predicated region
        $region37: #{tpu_custom_call.1} parent=31 // pred_check
          %p255 = pneg %p94
        $region38: #{tpu_custom_call.1} parent=31 // pred_check_branch
          %257 = sbr.rel (%p255) target = $region40
        $region39: #{tpu_custom_call.1} parent=31 // pred_region
          %258 = dma.done %s251, 128
        $region40: #{tpu_custom_call.1} parent=31 // pred_fallthru
          _
        %s259 = sand.u32 %s23, 1
        %s260 = scalar_lea.sflag [#allocation6], %s259
        %s261 = sand.u32 %s113, 1
        %s262 = smul.addr %s261, 8
        %s263 = scalar_lea.vmem [#allocation7], %s262
        // Predicated region
        $region41: #{tpu_custom_call.1} parent=31 // pred_check
          %p264 = pneg %p126
        $region42: #{tpu_custom_call.1} parent=31 // pred_check_branch
          %266 = sbr.rel (%p264) target = $region44
        $region43: #{tpu_custom_call.1} parent=31 // pred_region
          %267 = dma.done %s260, 128
        $region44: #{tpu_custom_call.1} parent=31 // pred_fallthru
          _
        %s268 = sand.u32 %s49, 1
        %s269 = scalar_lea.sflag [#allocation3], %s268
        %s270 = sand.u32 %s49, 1
        %s271 = smul.addr %s270, 8
        %s272 = scalar_lea.vmem [#allocation2], %s271
        %p273 = pneg %p62
        %p274 = pneg %p59
        %s275 = sand.u32 %s23, 1
        %s276 = scalar_lea.sflag [#allocation6], %s275
        %s277 = sand.u32 %s81, 1
        %s278 = smul.addr %s277, 8
        %s279 = scalar_lea.vmem [#allocation5], %s278
        %p280 = pneg %p94
        %p281 = pneg %p91
        %s282 = sand.u32 %s23, 1
        %s283 = scalar_lea.sflag [#allocation6], %s282
        %s284 = sand.u32 %s113, 1
        %s285 = smul.addr %s284, 8
        %s286 = scalar_lea.vmem [#allocation7], %s285
        %p287 = pneg %p126
        %p288 = pneg %p123
        %p289 = pneg %p152
        %p290 = pneg %p149
        %s291 = sand.u32 %s139, 1
        %s292 = scalar_lea.sflag [#allocation4], %s291
        %s293 = sand.u32 %s139, 1
        %s294 = scalar_lea.vmem [#allocation8], %s293
        %s295 = sadd.s32 %s27, %s28
        %p296 = scmp.lt.s32.totalorder %s295, 0
        %s297 = scalar_select %p296, %s295, 0
        %s298 = sadd.s32 %s27, %s28
        %p299 = scmp.lt.s32.totalorder %s298, 0
        %s300 = scalar_select %p299, %s298, 0
        %s301 = sadd.s32 %s27, %s28
        %p302 = scmp.lt.s32.totalorder %s301, 0
        %s303 = scalar_select %p302, %s301, 0
        %p304 = scmp.eq.s32.totalorder %s28, 0
        // Predicated region
        $region45: #{tpu_custom_call.1} parent=31 // pred_check
          %p305 = pneg %p304
        $region46: #{tpu_custom_call.1} parent=31 // pred_check_branch
          %307 = sbr.rel (%p305) target = $region48
        $region47: #{tpu_custom_call.1} parent=31 // pred_region
          %308 = vst [vmem:[%s294] sm:$0x1] 0.0
        $region48: #{tpu_custom_call.1} parent=31 // pred_fallthru
          _
        %v309 = vld [vmem:[%s245] sm:$0xff]
        %v310 = vld [vmem:[%s254] sm:$0xff]
        %v311 = vld [vmem:[%s263] sm:$0xff]
        %v312 = vsub.f32 %v309, %v310
        %v313 = vsub.f32 %v309, %v311
        %v314 = vmul.f32 %v312, %v312
        %v315 = vmul.f32 %v313, %v313
        %v316 = vsub.f32 %v314, %v315
        %vm317 = vcmask 261120
        %v318 = vsel %vm317, %v316, 0.0
        %319 = vadd.xlane.f32.xlu0 %v318
        %v320 = vpop.xlane.xlu0 %319
        %v321 = vadd.f32 %v320, 1.0
        %v322 = vmax.f32 %v321, 0.0
        %s323 = sadd.s32 %s27, %s28
        %s324 = smul.u32 %s323, 8
        %v325 = vlaneseq
        %v326 = vshrl.u32 %v325, 7
        %v327 = vstv %s324
        %v328 = vadd.s32 %v327, %v326
        %vm329 = vcmp.lt.s32.totalorder %v328, 8
        %v330 = vsel %vm329, %v322, 0.0
        %v331 = vld [vmem:[%s294] sm:$0x1]
        %vm332 = vcmask 7168
        %v333 = vsel %vm332, %v330, 0.0
        %334 = vadd.xlane.f32.xlu0 %v333
        %v335 = vpop.xlane.xlu0 %334
        %v336 = vrot.slane %v335, 4
        %v337 = vadd.f32 %v335, %v336
        %v338 = vrot.slane %v337, 2
        %v339 = vadd.f32 %v337, %v338
        %v340 = vrot.slane %v339, 1
        %v341 = vadd.f32 %v339, %v340
        %s342 = vtos %v341
        %v343 = vstv %s342
        %v344 = vadd.f32 %v331, %v343
        %345 = vst [vmem:[%s294] sm:$0x1] %v344
        %s346 = sand.u32 %s139, 1
        %s347 = scalar_lea.sflag [#allocation4], %s346
        %s348 = sand.u32 %s139, 1
        %s349 = scalar_lea.vmem [#allocation8], %s348
        // Predicated region
        $region49: #{tpu_custom_call.1} parent=31 // pred_check
          %p350 = pneg %p149
        $region50: #{tpu_custom_call.1} parent=31 // pred_check_branch
          %352 = sbr.rel (%p350) target = $region52
        $region51: #{tpu_custom_call.1} parent=31 // pred_region
          %s354 = ssub.s32 16, 16
          %355 = vsyncadd %s347, %s354
          %s356 = smul.addr %s27, 16
          %s357 = scalar_lea.hbm %s3, %s356
          %s359 = sshll.u32 %s349, 4
          %s360 = int_to_ptr.vmem [resolvable:$true] %s359
          %362 = dma.vmem_to_hbm [thread:$0]  %s360, 16, %s357, %s347
        $region52: #{tpu_custom_call.1} parent=31 // pred_fallthru
          _
      $region32: #{tpu_custom_call.1} parent=5 // pred_fallthru
        _
      %p363 = scmp.le.s32.totalorder 2, %s18
      // Predicated region
      $region53: #{tpu_custom_call.1} parent=5 // pred_check
        %p364 = pneg %p363
      $region54: #{tpu_custom_call.1} parent=5 // pred_check_branch
        %366 = sbr.rel (%p364) target = $region56
      $region55: #{tpu_custom_call.1} parent=5 // pred_region
        %s367 = ssub.s32 %s18, 2
        // Predicated region
        $region57: #{tpu_custom_call.1} parent=55 // pred_check
          %p368 = pneg %p155
        $region58: #{tpu_custom_call.1} parent=55 // pred_check_branch
          %370 = sbr.rel (%p368) target = $region60
        $region59: #{tpu_custom_call.1} parent=55 // pred_region
          %s371 = sand.u32 %s140, 1
          %s372 = scalar_lea.sflag [#allocation4], %s371
          %s373 = sand.u32 %s140, 1
          %s374 = scalar_lea.vmem [#allocation8], %s373
          %375 = dma.done %s372, 16
        $region60: #{tpu_custom_call.1} parent=55 // pred_fallthru
          _
      $region56: #{tpu_custom_call.1} parent=5 // pred_fallthru
        _
    $region6: #{tpu_custom_call.1} parent=1 // loop_footer
      %s22 = sadd.s32 1, %s18
    $region7: #{tpu_custom_call.1} parent=1 // loop_footer_branch
      %17 = sbr.rel target = $region3
    $region8: #{tpu_custom_call.1} parent=1 // loop_exit
      _
    %376 = vsyncpa [#allocation3], 1
    %s377 = scalar_lea.sflag [#allocation3], 1
    %378 = vsyncpa %s377, 1
    %379 = vsyncpa [#allocation6], 1
    %s380 = scalar_lea.sflag [#allocation6], 1
    %381 = vsyncpa %s380, 1
    %382 = vsyncpa [#allocation4], 1
    %s383 = scalar_lea.sflag [#allocation4], 1
    %384 = vsyncpa %s383, 1

</llo_original>
